<compile_context>
chip_gen: v7x
topology: tpu7x:2x2x1
jax: 0.10.0
libtpu: 0.0.40
codegen_flags: <defaults>
</compile_context>

<pallas_src>
import functools

import jax
import jax.numpy as jnp
from jax.experimental import pallas as pl
from jax.experimental.pallas import tpu as pltpu


def _round_up(x, m):
    return ((x + m - 1) // m) * m


def _largest_tile(dim_pad, cap, unit=128):
    """Largest multiple of `unit` that divides dim_pad and is <= cap."""
    best = unit
    t = unit
    limit = min(dim_pad, max(cap, unit))
    while t <= limit:
        if dim_pad % t == 0:
            best = t
        t += unit
    return best


def _pick_tm(m, row_align, tm_cap):
    """Largest row-tile (from a descending candidate list) whose padding waste
    over the minimally-aligned M is at most ~12.5%."""
    m_aligned = _round_up(m, row_align)
    allowed = max(row_align, m_aligned // 8)
    for c in (1024, 512, 256, 128, 64, 32, 16, 8):
        if c > tm_cap or c < row_align or c % row_align:
            continue
        if _round_up(m, c) - m_aligned <= allowed:
            return c
    return row_align


def _vmem_bytes(tm_e, tn_e, tk_e, x_isz, w_isz, out_isz, multi_k):
    b = (2 * tm_e * tk_e * x_isz        # double-buffered x tiles
         + 2 * tk_e * tn_e * w_isz      # double-buffered W tiles
         + 2 * tn_e * 4                 # bias tiles (f32, tiny)
         + 2 * tm_e * tn_e * out_isz)   # double-buffered output tiles
    if multi_k:
        b += tm_e * tn_e * 4            # f32 accumulator scratch
    return b


# ---------------------------------------------------------------------------
# Kernels
# ---------------------------------------------------------------------------

def _proj_kernel_fused(x_ref, w_ref, b_ref, o_ref):
    """Single K block: one MXU pass + f32 bias epilogue (no accumulator)."""
    acc = jnp.dot(x_ref[...], w_ref[...], preferred_element_type=jnp.float32)
    o_ref[...] = (acc + b_ref[...]).astype(o_ref.dtype)


def _proj_kernel_ksplit(x_ref, w_ref, b_ref, o_ref, acc_ref):
    """K-tiled fallback: direct write on k==0 (no zero-init RMW), += after."""
    kk = pl.program_id(2)
    partial = jnp.dot(x_ref[...], w_ref[...], preferred_element_type=jnp.float32)

    @pl.when(kk == 0)
    def _():
        acc_ref[...] = partial

    @pl.when(kk > 0)
    def _():
        acc_ref[...] += partial

    @pl.when(kk == pl.num_programs(2) - 1)
    def _():
        o_ref[...] = (acc_ref[...] + b_ref[...]).astype(o_ref.dtype)


# ---------------------------------------------------------------------------
# Parameter preparation (one-time, outside the jitted forward)
# ---------------------------------------------------------------------------

def prepare_params(weight, bias, compute_dtype=jnp.bfloat16):
    """Convert PyTorch-layout Linear params once.

    weight: (out, in)  -> transposed to (K=in, N=out), cast to compute_dtype,
                          zero-padded to 128-multiples in both dims.
    bias:   (out,)     -> f32, zero-padded to 128-multiple, reshaped (1, N_pad).

    Returns (w_pad, b_pad, out_features).  None of this runs per call.
    """
    w_kn = jnp.asarray(weight).T                     # (K, N)
    k_dim, n_dim = w_kn.shape
    k_pad = _round_up(k_dim, 128)
    n_pad = _round_up(n_dim, 128)

    w_kn = w_kn.astype(compute_dtype)
    if (k_pad, n_pad) != (k_dim, n_dim):
        w_kn = jnp.pad(w_kn, ((0, k_pad - k_dim), (0, n_pad - n_dim)))

    b = jnp.asarray(bias).astype(jnp.float32)
    if n_pad != n_dim:
        b = jnp.pad(b, (0, n_pad - n_dim))
    b = b.reshape(1, n_pad)
    return w_kn, b, int(n_dim)


# ---------------------------------------------------------------------------
# Forward
# ---------------------------------------------------------------------------

@functools.partial(jax.jit, static_argnames=("out_features", "tm", "tn", "tk"))
def minigpt_forward(x, w_pad, b_pad, *, out_features, tm=512, tn=512, tk=2048):
    """x: (B, T, C); w_pad: (K_pad, N_pad) pre-transposed/padded; b_pad: (1, N_pad)."""
    bsz, num_tokens, c = x.shape
    if num_tokens % 4 != 0:
        raise ValueError("num_tokens must be divisible by 4")
    k_dim = 4 * c
    k_pad, n_pad = w_pad.shape
    if k_pad != _round_up(k_dim, 128):
        raise ValueError("weight inner-dim mismatch with 4 * mm_hidden_size")
    n = out_features

    t4 = num_tokens // 4
    m = bsz * t4

    out_dtype = x.dtype
    compute_dtype = w_pad.dtype
    xm = x.reshape(m, k_dim)                    # reshape glue stays in plain JAX
    if xm.dtype != compute_dtype:
        xm = xm.astype(compute_dtype)           # bf16 default: halves x stream too

    x_isz = jnp.dtype(compute_dtype).itemsize
    w_isz = jnp.dtype(compute_dtype).itemsize
    out_isz = jnp.dtype(out_dtype).itemsize
    row_align = 8 if min(x_isz, out_isz) >= 4 else 16

    # Generation-aware VMEM budget (v7x has only 64 MiB / core).
    try:
        vmem_cap = int(pltpu.get_tpu_info().vmem_capacity_bytes)
    except Exception:
        vmem_cap = 64 << 20
    budget_cap = int(0.75 * vmem_cap)

    # Tile selection: tn/tk divide the padded dims (no weight padding here).
    tn_e = _largest_tile(n_pad, max(tn, 128))
    tm_e = _pick_tm(m, row_align, max(tm, row_align))

    # Keep >= 2 parallel grid points when possible (v7x has 2 TCs per chip).
    if _round_up(m, tm_e) // tm_e == 1 and n_pad // tn_e == 1 and n_pad >= 256:
        tn_e = _largest_tile(n_pad, n_pad // 2)

    # Prefer collapsing the K grid axis entirely (memory-bound problem).
    if _vmem_bytes(tm_e, tn_e, k_pad, x_isz, w_isz, out_isz, False) <= budget_cap:
        tk_e = k_pad
    else:
        tk_e = _largest_tile(k_pad, max(tk, 128))

    # Shrink (tk first, then tm, then tn) if still over budget.
    while _vmem_bytes(tm_e, tn_e, tk_e, x_isz, w_isz, out_isz,
                      tk_e < k_pad) > budget_cap:
        if tk_e > 128:
            tk_e = _largest_tile(k_pad, tk_e // 2)
        elif tm_e > row_align:
            tm_e = max(row_align, (tm_e // 2) // row_align * row_align)
        elif tn_e > 128:
            tn_e = _largest_tile(n_pad, tn_e // 2)
        else:
            break

    m_pad = _round_up(m, tm_e)
    if (m_pad, k_pad) != (m, k_dim):
        xm = jnp.pad(xm, ((0, m_pad - m), (0, k_pad - k_dim)))

    nm = m_pad // tm_e
    nn = n_pad // tn_e
    nk = k_pad // tk_e
    multi_k = nk > 1

    bytes_needed = _vmem_bytes(tm_e, tn_e, tk_e, x_isz, w_isz, out_isz, multi_k)
    vmem_limit = int(min(max(bytes_needed + (4 << 20), 32 << 20), budget_cap))

    cost = pl.CostEstimate(
        flops=2 * m * k_dim * n,
        transcendentals=0,
        bytes_accessed=(m * k_dim * x_isz + k_pad * n_pad * w_isz
                        + n_pad * 4 + m * n * out_isz),
    )

    if not multi_k:
        out = pl.pallas_call(
            _proj_kernel_fused,
            out_shape=jax.ShapeDtypeStruct((m_pad, n_pad), out_dtype),
            grid_spec=pltpu.PrefetchScalarGridSpec(
                num_scalar_prefetch=0,
                grid=(nm, nn),
                in_specs=[
                    pl.BlockSpec((tm_e, k_pad), lambda i, j: (i, 0)),   # x
                    pl.BlockSpec((k_pad, tn_e), lambda i, j: (0, j)),   # W
                    pl.BlockSpec((1, tn_e), lambda i, j: (0, j)),       # bias
                ],
                out_specs=pl.BlockSpec((tm_e, tn_e), lambda i, j: (i, j)),
            ),
            compiler_params=pltpu.CompilerParams(
                dimension_semantics=("parallel", "parallel"),
                vmem_limit_bytes=vmem_limit,
            ),
            cost_estimate=cost,
        )(xm, w_pad, b_pad)
    else:
        out = pl.pallas_call(
            _proj_kernel_ksplit,
            out_shape=jax.ShapeDtypeStruct((m_pad, n_pad), out_dtype),
            grid_spec=pltpu.PrefetchScalarGridSpec(
                num_scalar_prefetch=0,
                grid=(nm, nn, nk),
                in_specs=[
                    pl.BlockSpec((tm_e, tk_e), lambda i, j, kk: (i, kk)),  # x
                    pl.BlockSpec((tk_e, tn_e), lambda i, j, kk: (kk, j)),  # W
                    pl.BlockSpec((1, tn_e), lambda i, j, kk: (0, j)),      # bias
                ],
                out_specs=pl.BlockSpec((tm_e, tn_e), lambda i, j, kk: (i, j)),
                scratch_shapes=[pltpu.VMEM((tm_e, tn_e), jnp.float32)],
            ),
            compiler_params=pltpu.CompilerParams(
                dimension_semantics=("parallel", "parallel", "arbitrary"),
                vmem_limit_bytes=vmem_limit,
            ),
            cost_estimate=cost,
        )(xm, w_pad, b_pad)

    return out[:m, :n].reshape(bsz, t4, n)


if __name__ == "__main__":
    # Small config: mm_hidden_size=32, hidden_size=64, batch=2, tokens=8.
    mm_hidden_size = 32
    hidden_size = 64
    batch, num_tokens = 2, 8

    key = jax.random.PRNGKey(0)
    kx, kw, kb = jax.random.split(key, 3)

    x = jax.random.normal(kx, (batch, num_tokens, mm_hidden_size), jnp.float32)
    # PyTorch weight layout (out, in) for Linear(4*inc, ouc).
    weight = jax.random.normal(kw, (hidden_size, mm_hidden_size * 4),
                               jnp.float32) * 0.02
    bias = jax.random.normal(kb, (hidden_size,), jnp.float32) * 0.02

    # Pure-JAX reference for the same semantics.
    ref = x.reshape(batch, num_tokens // 4, mm_hidden_size * 4) @ weight.T + bias

    # f32 compute path (tight tolerance check).
    w_f32, b_f32, n_out = prepare_params(weight, bias, compute_dtype=jnp.float32)
    out_f32 = minigpt_forward(x, w_f32, b_f32, out_features=n_out)
    out_f32 = jax.block_until_ready(out_f32)
    assert out_f32.shape == (batch, num_tokens // 4, hidden_size)
    assert jnp.allclose(out_f32, ref, atol=1e-5, rtol=1e-5)

    # Default bf16 compute path (recommended on v5e / v6e / v7x).
    w_bf, b_bf, n_out = prepare_params(weight, bias)   # bf16 default
    out_bf = minigpt_forward(x.astype(jnp.bfloat16), w_bf, b_bf,
                             out_features=n_out)
    out_bf = jax.block_until_ready(out_bf)
    assert out_bf.shape == (batch, num_tokens // 4, hidden_size)
    assert jnp.allclose(out_bf.astype(jnp.float32), ref, atol=2e-2, rtol=2e-2)

    print("KERNEL_OK")
</pallas_src>

<mosaic_0001>
module attributes {stable_mosaic.version = 11 : i64} {
  func.func @_proj_kernel_fused(%arg0: i32, %arg1: i32, %arg2: memref<16x128xf32, #tpu.memory_space<vmem>>, %arg3: memref<128x128xf32, #tpu.memory_space<vmem>>, %arg4: memref<1x128xf32, #tpu.memory_space<vmem>>, %arg5: memref<16x128xf32, #tpu.memory_space<vmem>>) attributes {dimension_semantics = [#tpu.dimension_semantics<parallel>, #tpu.dimension_semantics<parallel>], iteration_bounds = array<i64: 1, 1>, scalar_prefetch = 0 : i64, scratch_operands = 0 : i64, tpu.core_type = #tpu.core_type<tc>, window_params = [{transform_indices = @transform_0, window_bounds = array<i64: 16, 128>}, {transform_indices = @transform_1, window_bounds = array<i64: 128, 128>}, {transform_indices = @transform_2, window_bounds = array<i64: 1, 128>}, {transform_indices = @transform_3, window_bounds = array<i64: 16, 128>}]} {
    %c0 = arith.constant 0 : index
    %c0_0 = arith.constant 0 : index
    %0 = vector.load %arg2[%c0, %c0_0] : memref<16x128xf32, #tpu.memory_space<vmem>>, vector<16x128xf32>
    %c0_1 = arith.constant 0 : index
    %c0_2 = arith.constant 0 : index
    %1 = vector.load %arg3[%c0_1, %c0_2] : memref<128x128xf32, #tpu.memory_space<vmem>>, vector<128x128xf32>
    %cst = arith.constant dense<0.000000e+00> : vector<16x128xf32>
    %2 = tpu.matmul %0, %1, %cst {dimension_numbers = #tpu.dot_dimension_numbers<[1], [0], [0], [1], [0, 0, 1, 1], [], []>} : vector<16x128xf32>, vector<128x128xf32>, vector<16x128xf32> -> vector<16x128xf32>
    %c0_3 = arith.constant 0 : index
    %c0_4 = arith.constant 0 : index
    %3 = vector.load %arg4[%c0_3, %c0_4] : memref<1x128xf32, #tpu.memory_space<vmem>>, vector<1x128xf32>
    %4 = vector.broadcast %3 : vector<1x128xf32> to vector<16x128xf32>
    %5 = arith.addf %2, %4 : vector<16x128xf32>
    %c0_5 = arith.constant 0 : index
    %c0_6 = arith.constant 0 : index
    %6 = vector.load %arg5[%c0_5, %c0_6] : memref<16x128xf32, #tpu.memory_space<vmem>>, vector<16x128xf32>
    tpu.vector_store %arg5[%c0_5, %c0_6], %5 {strides = array<i32>} : memref<16x128xf32, #tpu.memory_space<vmem>>, vector<16x128xf32>,
    return
  }
  func.func @transform_0(%arg0: i32, %arg1: i32) -> (i32, i32) {
    %c0_i32 = arith.constant 0 : i32
    %c0_i32_0 = arith.constant 0 : i32
    return %arg0, %c0_i32 : i32, i32
  }
  func.func @transform_1(%arg0: i32, %arg1: i32) -> (i32, i32) {
    %c0_i32 = arith.constant 0 : i32
    %c0_i32_0 = arith.constant 0 : i32
    return %c0_i32, %arg1 : i32, i32
  }
  func.func @transform_2(%arg0: i32, %arg1: i32) -> (i32, i32) {
    %c0_i32 = arith.constant 0 : i32
    %c0_i32_0 = arith.constant 0 : i32
    return %c0_i32, %arg1 : i32, i32
  }
  func.func @transform_3(%arg0: i32, %arg1: i32) -> (i32, i32) {
    %c0_i32 = arith.constant 0 : i32
    return %arg0, %arg1 : i32, i32
  }
}

</mosaic_0001>

<llo_original>
// kernel: minigpt_forward.1
$region0: #{minigpt_forward.1}
  #allocation0 [shape = 'u32[]', space=smem, size = 0x4, offset = 0x4, fixed_abs, tag = 'smem constant byte address 0x4 - core index']
  #allocation1 [shape = 'u32[144,128]{1,0:T(1,128)}', space=vmem, size = 0x12000, scoped, tag = 'internal scratch']
  %s0 = inlined_call_operand.vmem [shape: f32[16,128], index: 0, kind: input, shape index: {}]
  %s1 = inlined_call_operand.hbm [shape: f32[128,128], index: 1, kind: input, shape index: {}]
  %s2 = inlined_call_operand.vmem [shape: f32[1,128], index: 2, kind: input, shape index: {}]
  %s3 = inlined_call_operand.vmem [shape: f32[16,128], index: 3, kind: output, shape index: {}]
  %s4 = sld [smem:[#allocation0]]
  $region26: #{minigpt_forward.1} parent=0
    _
  %s6 = ssub.s32 1, %s4
  %s7 = scalar_select 0, %s6, %s4
  $region1: #{minigpt_forward.1} parent=0
    #allocation2 [shape = 'u8[65536]{0}', space=vmem, size = 0x10000, scoped, tag = 'input window, operand 1, single buffered']
    #allocation3 [shape = 's32[1]{0}', space=sflag, size = 0x4, scoped, tag = 'scoped memory for minigpt_forward.1']
    %8 = vsyncpa [#allocation3], 0
    // Predicated region
    $region2: #{minigpt_forward.1} parent=1 // pred_check
      _
    $region3: #{minigpt_forward.1} parent=1 // pred_check_branch
      %10 = sbr.rel (0) target = $region5
    $region4: #{minigpt_forward.1} parent=1 // pred_region
      _
    $region5: #{minigpt_forward.1} parent=1 // pred_fallthru
      _
    // Predicated region
    $region6: #{minigpt_forward.1} parent=1 // pred_check
      _
    $region7: #{minigpt_forward.1} parent=1 // pred_check_branch
      %12 = sbr.rel (0) target = $region9
    $region8: #{minigpt_forward.1} parent=1 // pred_region
      %s14 = ssub.s32 2048, 2048
      %15 = vsyncadd [#allocation3], %s14
      %s16 = sshll.u32 [#allocation2], 4
      %s17 = int_to_ptr.vmem [resolvable:$true] %s16
      %22 = dma.hbm_to_vmem [thread:$0]  %s1, 2048, %s17, [#allocation3], 128, 128, 8
    $region9: #{minigpt_forward.1} parent=1 // pred_fallthru
      _
    // Predicated region
    $region10: #{minigpt_forward.1} parent=1 // pred_check
      _
    $region11: #{minigpt_forward.1} parent=1 // pred_check_branch
      %24 = sbr.rel (0) target = $region13
    $region12: #{minigpt_forward.1} parent=1 // pred_region
      _
    $region13: #{minigpt_forward.1} parent=1 // pred_fallthru
      _
    // Predicated region
    $region14: #{minigpt_forward.1} parent=1 // pred_check
      _
    $region15: #{minigpt_forward.1} parent=1 // pred_check_branch
      %26 = sbr.rel (0) target = $region17
    $region16: #{minigpt_forward.1} parent=1 // pred_region
      %27 = dma.done [#allocation3], 2048
    $region17: #{minigpt_forward.1} parent=1 // pred_fallthru
      _
    %v28 = vld [vmem:[%s0] sm:$0xff]
    %v29 = vld [vmem:[%s0 + $0x8] sm:$0xff]
    %v30 = vld [vmem:[#allocation2] sm:$0xff]
    %v31 = vld [vmem:[#allocation2 + $0x8] sm:$0xff]
    %v32 = vld [vmem:[#allocation2 + $0x10] sm:$0xff]
    %v33 = vld [vmem:[#allocation2 + $0x18] sm:$0xff]
    %v34 = vld [vmem:[#allocation2 + $0x20] sm:$0xff]
    %v35 = vld [vmem:[#allocation2 + $0x28] sm:$0xff]
    %v36 = vld [vmem:[#allocation2 + $0x30] sm:$0xff]
    %v37 = vld [vmem:[#allocation2 + $0x38] sm:$0xff]
    %v38 = vld [vmem:[#allocation2 + $0x40] sm:$0xff]
    %v39 = vld [vmem:[#allocation2 + $0x48] sm:$0xff]
    %v40 = vld [vmem:[#allocation2 + $0x50] sm:$0xff]
    %v41 = vld [vmem:[#allocation2 + $0x58] sm:$0xff]
    %v42 = vld [vmem:[#allocation2 + $0x60] sm:$0xff]
    %v43 = vld [vmem:[#allocation2 + $0x68] sm:$0xff]
    %v44 = vld [vmem:[#allocation2 + $0x70] sm:$0xff]
    %v45 = vld [vmem:[#allocation2 + $0x78] sm:$0xff]
    %v46 = vld [vmem:[%s2] sm:$0x1]
    %v48 = vlaneseq
    %v49 = vshrl.u32 %v48, 7
    %v50 = vsub.s32 0, %v49
    %v51 = vrot.slane %v46, %v50
    %53 = vmatprep.subr.mxu0 0.0
    %54 = vmatpush1.msra.mxu0 %v30
    %55 = vmatprep.subr.mxu0 0.0
    %56 = vmatpush1.msra.mxu0 %v31
    %57 = vmatprep.subr.mxu0 0.0
    %58 = vmatpush1.msra.mxu0 %v32
    %59 = vmatprep.subr.mxu0 0.0
    %60 = vmatpush1.msra.mxu0 %v33
    %61 = vmatprep.subr.mxu0 0.0
    %62 = vmatpush1.msra.mxu0 %v34
    %63 = vmatprep.subr.mxu0 0.0
    %64 = vmatpush1.msra.mxu0 %v35
    %65 = vmatprep.subr.mxu0 0.0
    %66 = vmatpush1.msra.mxu0 %v36
    %67 = vmatprep.subr.mxu0 0.0
    %68 = vmatpush1.msra.mxu0 %v37
    %69 = vmatprep.subr.mxu0 0.0
    %70 = vmatpush1.msra.mxu0 %v38
    %71 = vmatprep.subr.mxu0 0.0
    %72 = vmatpush1.msra.mxu0 %v39
    %73 = vmatprep.subr.mxu0 0.0
    %74 = vmatpush1.msra.mxu0 %v40
    %75 = vmatprep.subr.mxu0 0.0
    %76 = vmatpush1.msra.mxu0 %v41
    %77 = vmatprep.subr.mxu0 0.0
    %78 = vmatpush1.msra.mxu0 %v42
    %79 = vmatprep.subr.mxu0 0.0
    %80 = vmatpush1.msra.mxu0 %v43
    %81 = vmatprep.subr.mxu0 0.0
    %82 = vmatpush1.msra.mxu0 %v44
    %83 = vmatprep.subr.mxu0 0.0
    %84 = vmatpush1.msra.mxu0 %v45
    %85 = vmatprep.subr.mxu0 0.0
    %86 = vmatpush1.msra.mxu0 0.0
    %87 = vmatprep.subr.mxu0 0.0
    %88 = vmatpush1.msra.mxu0 0.0
    %89 = vmatprep.subr.mxu0 0.0
    %90 = vmatpush1.msra.mxu0 0.0
    %91 = vmatprep.subr.mxu0 0.0
    %92 = vmatpush1.msra.mxu0 0.0
    %93 = vmatprep.subr.mxu0 0.0
    %94 = vmatpush1.msra.mxu0 0.0
    %95 = vmatprep.subr.mxu0 0.0
    %96 = vmatpush1.msra.mxu0 0.0
    %97 = vmatprep.subr.mxu0 0.0
    %98 = vmatpush1.msra.mxu0 0.0
    %99 = vmatprep.subr.mxu0 0.0
    %100 = vmatpush1.msra.mxu0 0.0
    %101 = vmatprep.subr.mxu0 0.0
    %102 = vmatpush1.msra.mxu0 0.0
    %103 = vmatprep.subr.mxu0 0.0
    %104 = vmatpush1.msra.mxu0 0.0
    %105 = vmatprep.subr.mxu0 0.0
    %106 = vmatpush1.msra.mxu0 0.0
    %107 = vmatprep.subr.mxu0 0.0
    %108 = vmatpush1.msra.mxu0 0.0
    %109 = vmatprep.subr.mxu0 0.0
    %110 = vmatpush1.msra.mxu0 0.0
    %111 = vmatprep.subr.mxu0 0.0
    %112 = vmatpush1.msra.mxu0 0.0
    %113 = vmatprep.subr.mxu0 0.0
    %114 = vmatpush1.msra.mxu0 0.0
    %115 = vmatprep.subr.mxu0 0.0
    %116 = vmatpush1.msra.mxu0 0.0
    %117 = vmatprep.mubr.f32.mxu0 0.0
    %118 = vmatmul.mubr.f32.gmra.mrb[0].mxu0 %v28
    %v119 = vpop.f32.mrb[0].mxu0
    %v120 = vadd.f32 %v51, %v119
    %v121 = vpop.f32.mrb[0].mxu0
    %122 = vmatprep.mubr.f32.mxu0 0.0
    %123 = vmatmul.mubr.f32.gmra.mrb[0].mxu0 %v29
    %v124 = vpop.f32.mrb[0].mxu0
    %v125 = vadd.f32 %v51, %v124
    %v126 = vpop.f32.mrb[0].mxu0
    %127 = vdwg.mxu0
    %128 = vst [vmem:[%s3] sm:$0xff] %v120
    %129 = vst [vmem:[%s3 + $0x8] sm:$0xff] %v125
    // Predicated region
    $region18: #{minigpt_forward.1} parent=1 // pred_check
      _
    $region19: #{minigpt_forward.1} parent=1 // pred_check_branch
      %131 = sbr.rel (0) target = $region21
    $region20: #{minigpt_forward.1} parent=1 // pred_region
      _
    $region21: #{minigpt_forward.1} parent=1 // pred_fallthru
      _
    // Predicated region
    $region22: #{minigpt_forward.1} parent=1 // pred_check
      _
    $region23: #{minigpt_forward.1} parent=1 // pred_check_branch
      %133 = sbr.rel (0) target = $region25
    $region24: #{minigpt_forward.1} parent=1 // pred_region
      _
    $region25: #{minigpt_forward.1} parent=1 // pred_fallthru
      _
    %134 = vsyncpa [#allocation3], 1

</llo_original>
